<compile_context>
chip_gen: v5e
topology: v5e:2x2
jax: 0.10.0
libtpu: 0.0.40
codegen_flags: <defaults>
</compile_context>

<pallas_src>
import jax
import jax.numpy as jnp
from jax.experimental import pallas as pl
from jax.experimental.pallas import tpu as pltpu

_VMEM_LIMIT = 32 * 1024 * 1024  # safe on v5e/v6e (128 MiB) and v7x (64 MiB physical)


def _round_up(x, m):
    return ((x + m - 1) // m) * m


def _select_tm(M, target):
    """Row-tile size.  Large fixed tile for big M (ragged last tile is fine); for small M
    split into >=2 steps so both v7x TensorCores get work (harmless on 1-TC chips)."""
    if M <= 8:
        return M
    if M <= target:
        return min(M, _round_up(pl.cdiv(M, 2), 8))
    return target


def _erf(x):
    # Abramowitz & Stegun 7.1.26 rational approximation (|err| < 1.5e-7); uses only
    # exp/mul/add/select so it lowers cleanly in Mosaic (parity with torch's exact-erf GELU).
    a1, a2, a3, a4, a5 = (0.254829592, -0.284496736, 1.421413741,
                          -1.453152027, 1.061405429)
    p = 0.3275911
    sgn = jnp.where(x >= 0.0, 1.0, -1.0)
    ax = jnp.abs(x)
    t = 1.0 / (1.0 + p * ax)
    poly = ((((a5 * t + a4) * t + a3) * t + a2) * t + a1) * t
    return sgn * (1.0 - poly * jnp.exp(-ax * ax))


def _gelu_exact(y):
    return 0.5 * y * (1.0 + _erf(y * 0.7071067811865476))


# ----------------------------- Pallas kernels -----------------------------

def linear(x, w, b, *, ln=None, activation=None, residual=None,
           out_dtype=jnp.bfloat16, tm_target=1024):
    """Fused tiled kernel: y = [LayerNorm](x) @ w + b [-> GELU] [+ residual].

    Grid over rows (ragged last tile handled by Pallas); weight/bias blocks are resident
    (constant index_map) while the M axis is "parallel".  Matmul is bf16 x bf16 -> f32 on
    the MXU; activations land in HBM as bf16 (out_dtype) unless overridden.
    """
    M, K = x.shape
    Kw, N = w.shape
    assert K == Kw
    TM = _select_tm(M, tm_target)
    grid = (pl.cdiv(M, TM),)

    has_ln = ln is not None
    has_res = residual is not None

    in_specs = [
        pl.BlockSpec((TM, K), lambda i: (i, 0)),   # x row tile
        pl.BlockSpec((K, N), lambda i: (0, 0)),    # weight (resident across M grid)
        pl.BlockSpec((1, N), lambda i: (0, 0)),    # bias (1, N) f32, kernel-ready
    ]
    args = [x, w, b]
    if has_ln:
        g, bb = ln
        in_specs += [pl.BlockSpec((1, K), lambda i: (0, 0)),
                     pl.BlockSpec((1, K), lambda i: (0, 0))]
        args += [g, bb]
    if has_res:
        in_specs.append(pl.BlockSpec((TM, N), lambda i: (i, 0)))
        args.append(residual)

    def kernel(*refs):
        it = iter(refs)
        x_ref = next(it)
        w_ref = next(it)
        b_ref = next(it)
        g_ref = bt_ref = r_ref = None
        if has_ln:
            g_ref = next(it)
            bt_ref = next(it)
        if has_res:
            r_ref = next(it)
        o_ref = next(it)

        if has_ln:  # fused LayerNorm prologue (eps=1e-6 as in DINOv2), stats in f32
            xv = x_ref[...].astype(jnp.float32)
            mean = jnp.mean(xv, axis=-1, keepdims=True)
            xc = xv - mean
            var = jnp.mean(xc * xc, axis=-1, keepdims=True)
            xv = xc * jax.lax.rsqrt(var + 1e-6) * g_ref[...] + bt_ref[...]
            xb = xv.astype(jnp.bfloat16)
        else:
            xb = x_ref[...].astype(jnp.bfloat16)
        y = jnp.dot(xb, w_ref[...], preferred_element_type=jnp.float32)
        y = y + b_ref[...]
        if activation == "gelu":
            y = _gelu_exact(y)          # exact-erf GELU (matches torch nn.GELU default)
        if has_res:                     # fused residual epilogue
            y = y + r_ref[...].astype(jnp.float32)
        o_ref[...] = y.astype(o_ref.dtype)

    return pl.pallas_call(
        kernel,
        out_shape=jax.ShapeDtypeStruct((M, N), out_dtype),
        grid=grid,
        in_specs=in_specs,
        out_specs=pl.BlockSpec((TM, N), lambda i: (i, 0)),
        compiler_params=pltpu.CompilerParams(
            dimension_semantics=("parallel",),
            vmem_limit_bytes=_VMEM_LIMIT),
    )(*args)


def attention_block(qkv, h, proj_w, proj_b, *, batch, heads, head_dim,
                    seq_pad, seq_real):
    """Multi-head softmax(q k^T / sqrt(hd)) v with fused output projection
    (LayerScale folded into proj_w / proj_b) and fused residual add.

    grid=(batch,): one (seq_pad, 3*dim) qkv slab per step, unrolled Python head loop,
    proj_w resident in VMEM, key-padding handled with a single additive bias hoisted out
    of the head loop.  Output is written straight back into the bf16 residual-stream
    layout (B*S_pad, dim).
    """
    dim = heads * head_dim
    M = batch * seq_pad
    assert qkv.shape == (M, 3 * dim) and h.shape == (M, dim)
    scale = float(head_dim) ** -0.5

    def kernel(qkv_ref, w_ref, b_ref, r_ref, o_ref):
        qkv_v = qkv_ref[...]
        if seq_pad > seq_real:  # additive key-padding mask, shared by all heads
            col = jax.lax.broadcasted_iota(jnp.int32, (seq_pad, seq_pad), 1)
            kbias = jnp.where(col < seq_real, 0.0, -1e30).astype(jnp.float32)
        else:
            kbias = None
        outs = []
        for hh in range(heads):
            lo = hh * head_dim
            q = qkv_v[:, lo:lo + head_dim].astype(jnp.bfloat16)
            k = qkv_v[:, dim + lo:dim + lo + head_dim].astype(jnp.bfloat16)
            v = qkv_v[:, 2 * dim + lo:2 * dim + lo + head_dim].astype(jnp.bfloat16)
            s = jax.lax.dot_general(q, k, (((1,), (1,)), ((), ())),
                                    preferred_element_type=jnp.float32) * scale
            if kbias is not None:
                s = s + kbias
            m = jnp.max(s, axis=-1, keepdims=True)
            p = jnp.exp(s - m)
            # approx reciprocal: ~1e-4 rel. error in the softmax denom, fine for inference
            inv = pl.reciprocal(jnp.sum(p, axis=-1, keepdims=True), approx=True)
            o = jnp.dot(p.astype(jnp.bfloat16), v, preferred_element_type=jnp.float32)
            outs.append(o * inv)
        a = jnp.concatenate(outs, axis=-1).astype(jnp.bfloat16)   # (S_pad, dim)
        y = jnp.dot(a, w_ref[...], preferred_element_type=jnp.float32)
        y = y + b_ref[...] + r_ref[...].astype(jnp.float32)       # proj bias + residual
        o_ref[...] = y.astype(o_ref.dtype)

    return pl.pallas_call(
        kernel,
        out_shape=jax.ShapeDtypeStruct((M, dim), h.dtype),
        grid=(batch,),
        in_specs=[
            pl.BlockSpec((seq_pad, 3 * dim), lambda b: (b, 0)),   # per-batch qkv slab
            pl.BlockSpec((dim, dim), lambda b: (0, 0)),           # proj_w (resident)
            pl.BlockSpec((1, dim), lambda b: (0, 0)),             # proj_b (LS folded)
            pl.BlockSpec((seq_pad, dim), lambda b: (b, 0)),       # residual h
        ],
        out_specs=pl.BlockSpec((seq_pad, dim), lambda b: (b, 0)),
        compiler_params=pltpu.CompilerParams(
            dimension_semantics=("parallel",),
            vmem_limit_bytes=_VMEM_LIMIT),
    )(qkv, proj_w, proj_b, h)


# ----------------------------- params & forward -----------------------------

def init_params(key, *, in_chans, patch, num_patches, dim, depth, heads, mlp_ratio,
                num_classes):
    # TODO(synk): torch.hub pretrained DINOv2 checkpoint is not loadable here; weights are
    # synthesized deterministically with the same architecture/shapes.
    def nrm(k, shape, std=0.02):
        return std * jax.random.normal(k, shape, dtype=jnp.float32)

    keys = jax.random.split(key, depth + 4)
    hidden = dim * mlp_ratio
    params = {
        "patch_w": nrm(keys[0], (in_chans * patch * patch, dim)),  # conv 14x14/s14 as matmul
        "patch_b": jnp.zeros((dim,), jnp.float32),
        "cls_token": nrm(keys[1], (1, 1, dim)),
        "pos_embed": nrm(keys[2], (1, 1 + num_patches, dim)),
        "norm_g": jnp.ones((dim,), jnp.float32),
        "norm_b": jnp.zeros((dim,), jnp.float32),
        "blocks": [],
    }
    for i in range(depth):
        bk = jax.random.split(keys[3 + i], 4)
        params["blocks"].append({
            "norm1_g": jnp.ones((dim,), jnp.float32),
            "norm1_b": jnp.zeros((dim,), jnp.float32),
            "qkv_w": nrm(bk[0], (dim, 3 * dim)),
            "qkv_b": jnp.zeros((3 * dim,), jnp.float32),
            "proj_w": nrm(bk[1], (dim, dim)),
            "proj_b": jnp.zeros((dim,), jnp.float32),
            "ls1": jnp.full((dim,), 1e-5, jnp.float32),   # LayerScale
            "norm2_g": jnp.ones((dim,), jnp.float32),
            "norm2_b": jnp.zeros((dim,), jnp.float32),
            "fc1_w": nrm(bk[2], (dim, hidden)),
            "fc1_b": jnp.zeros((hidden,), jnp.float32),
            "fc2_w": nrm(bk[3], (hidden, dim)),
            "fc2_b": jnp.zeros((dim,), jnp.float32),
            "ls2": jnp.full((dim,), 1e-5, jnp.float32),
        })
    ck = jax.random.split(keys[depth + 3], 2)
    params["cls_w"] = nrm(ck[0], (dim, num_classes))      # nn.Linear(dim, num_classes)
    params["cls_b"] = jnp.zeros((num_classes,), jnp.float32)
    return params


def prepare_params(params, *, num_classes, lane=128):
    """Kernel-ready params: fold LayerScale into proj/fc2 (exact algebra), cast matmul
    weights to bf16, biases/LN params to (1, N)/(1, K) f32, pad the patch-embed contraction
    dim and the classifier output width to lane multiples, bf16 cls_token/pos_embed so the
    residual stream stays bf16."""
    dim = params["patch_w"].shape[1]
    kp = params["patch_w"].shape[0]
    kp_pad = _round_up(kp, lane)
    patch_w = jnp.zeros((kp_pad, dim), jnp.float32).at[:kp, :].set(params["patch_w"])
    hidden = params["blocks"][0]["fc1_w"].shape[1]
    p = {
        "patch_k": kp,
        "patch_w": patch_w.astype(jnp.bfloat16),
        "patch_b": params["patch_b"].reshape(1, dim),
        "cls_token": params["cls_token"].astype(jnp.bfloat16),
        "pos_embed": params["pos_embed"].astype(jnp.bfloat16),
        "norm_g": params["norm_g"].reshape(1, dim),
        "norm_b": params["norm_b"].reshape(1, dim),
        "blocks": [],
        "num_classes": num_classes,
    }
    for blk in params["blocks"]:
        p["blocks"].append({
            "norm1_g": blk["norm1_g"].reshape(1, dim),
            "norm1_b": blk["norm1_b"].reshape(1, dim),
            "qkv_w": blk["qkv_w"].astype(jnp.bfloat16),
            "qkv_b": blk["qkv_b"].reshape(1, 3 * dim),
            # LayerScale folded: h + ls*(a@W + b) == h + a@(W*ls) + (b*ls)
            "proj_w": (blk["proj_w"] * blk["ls1"][None, :]).astype(jnp.bfloat16),
            "proj_b": (blk["proj_b"] * blk["ls1"]).reshape(1, dim),
            "norm2_g": blk["norm2_g"].reshape(1, dim),
            "norm2_b": blk["norm2_b"].reshape(1, dim),
            "fc1_w": blk["fc1_w"].astype(jnp.bfloat16),
            "fc1_b": blk["fc1_b"].reshape(1, hidden),
            "fc2_w": (blk["fc2_w"] * blk["ls2"][None, :]).astype(jnp.bfloat16),
            "fc2_b": (blk["fc2_b"] * blk["ls2"]).reshape(1, dim),
        })
    n_pad = _round_up(max(num_classes, lane), lane)
    cls_w = jnp.zeros((dim, n_pad), jnp.float32).at[:, :num_classes].set(params["cls_w"])
    cls_b = jnp.zeros((1, n_pad), jnp.float32).at[0, :num_classes].set(params["cls_b"])
    p["cls_w"] = cls_w.astype(jnp.bfloat16)
    p["cls_b"] = cls_b
    return p


def dinov2_linear_probe_forward(prepped, x, *, patch, heads):
    """x: (B, C, H, W) NCHW float32 -> logits (B, num_classes)."""
    B, C, H, W = x.shape
    dim = prepped["patch_w"].shape[1]
    hd = dim // heads
    gh, gw = H // patch, W // patch
    Np = gh * gw
    kp = prepped["patch_k"]
    kp_pad = prepped["patch_w"].shape[0]

    # patchify (glue): NCHW -> (B*N, C*patch*patch), each patch flattened (C, ph, pw)
    # to match Conv2d weight.reshape(dim, C*p*p) ordering; zero-pad K to a lane multiple.
    xp = x.reshape(B, C, gh, patch, gw, patch)
    xp = xp.transpose(0, 2, 4, 1, 3, 5).reshape(B * Np, kp)
    if kp_pad > kp:
        xp = jnp.pad(xp, ((0, 0), (0, kp_pad - kp)))
    xp = xp.astype(jnp.bfloat16)
    tokens = linear(xp, prepped["patch_w"], prepped["patch_b"]).reshape(B, Np, dim)

    cls = jnp.broadcast_to(prepped["cls_token"], (B, 1, dim))
    h = jnp.concatenate([cls, tokens], axis=1) + prepped["pos_embed"]   # bf16 (B, S, dim)
    S = Np + 1
    S_pad = _round_up(S, 8)              # (8,128) tiling; padded keys masked in attention.
    if S_pad > S:                        # padded query rows carry junk-but-finite values;
        h = jnp.pad(h, ((0, 0), (0, S_pad - S), (0, 0)))  # only the cls row (0) is read.
    h = h.reshape(B * S_pad, dim)        # bf16 residual stream

    for blk in prepped["blocks"]:
        # attention sub-block: fused LN->qkv, then fused attention+proj+residual kernel
        qkv = linear(h, blk["qkv_w"], blk["qkv_b"],
                     ln=(blk["norm1_g"], blk["norm1_b"]))
        h = attention_block(qkv, h, blk["proj_w"], blk["proj_b"],
                            batch=B, heads=heads, head_dim=hd,
                            seq_pad=S_pad, seq_real=S)                  # LayerScale folded

        # MLP sub-block: fused LN->fc1->GELU, fused residual in fc2
        y = linear(h, blk["fc1_w"], blk["fc1_b"],
                   ln=(blk["norm2_g"], blk["norm2_b"]), activation="gelu")
        h = linear(y, blk["fc2_w"], blk["fc2_b"], residual=h)           # LayerScale folded

    # x_norm_clstoken (final norm fused into the classifier kernel); head = nn.Identity()
    feats = h.reshape(B, S_pad, dim)[:, 0, :]                           # (B, dim) bf16
    logits_pad = linear(feats, prepped["cls_w"], prepped["cls_b"],
                        ln=(prepped["norm_g"], prepped["norm_b"]),
                        out_dtype=jnp.float32)                          # (B, 128) f32
    return logits_pad[:, :prepped["num_classes"]]


if __name__ == "__main__":
    # dinov2_vits14-style config (dim=384, patch=14, heads=6) at small scale:
    # 28x28 input -> 2x2=4 patches + cls = 5 tokens (padded to 8); shallow depth for demo.
    PATCH, IN_CHANS, DIM, DEPTH, HEADS, MLP_RATIO, NUM_CLASSES = 14, 3, 384, 2, 6, 4, 10
    IMG = 28
    num_patches = (IMG // PATCH) ** 2

    key = jax.random.PRNGKey(0)
    x_key, p_key = jax.random.split(key)
    x = jax.random.normal(x_key, (2, IN_CHANS, IMG, IMG), dtype=jnp.float32)

    params = init_params(p_key, in_chans=IN_CHANS, patch=PATCH, num_patches=num_patches,
                         dim=DIM, depth=DEPTH, heads=HEADS, mlp_ratio=MLP_RATIO,
                         num_classes=NUM_CLASSES)
    prepped = prepare_params(params, num_classes=NUM_CLASSES)

    logits = dinov2_linear_probe_forward(prepped, x, patch=PATCH, heads=HEADS)
    jax.block_until_ready(logits)
    assert logits.shape == (2, NUM_CLASSES)
    assert bool(jnp.all(jnp.isfinite(logits)))
    print("KERNEL_OK")
</pallas_src>

<mosaic_0001>
module attributes {stable_mosaic.version = 11 : i64} {
  func.func @kernel(%arg0: i32, %arg1: memref<8x640xbf16, #tpu.memory_space<vmem>>, %arg2: memref<640x384xbf16, #tpu.memory_space<vmem>>, %arg3: memref<1x384xf32, #tpu.memory_space<vmem>>, %arg4: memref<8x384xbf16, #tpu.memory_space<vmem>>) attributes {dimension_semantics = [#tpu.dimension_semantics<parallel>], iteration_bounds = array<i64: 1>, scalar_prefetch = 0 : i64, scratch_operands = 0 : i64, tpu.core_type = #tpu.core_type<tc>, window_params = [{transform_indices = @transform_0, window_bounds = array<i64: 8, 640>}, {pipeline_mode = #tpu.pipeline_mode<synchronous>, transform_indices = @transform_1, window_bounds = array<i64: 640, 384>}, {pipeline_mode = #tpu.pipeline_mode<synchronous>, transform_indices = @transform_2, window_bounds = array<i64: 1, 384>}, {transform_indices = @transform_3, window_bounds = array<i64: 8, 384>}]} {
    %c0 = arith.constant 0 : index
    %c0_0 = arith.constant 0 : index
    %0 = vector.load %arg1[%c0, %c0_0] : memref<8x640xbf16, #tpu.memory_space<vmem>>, vector<8x640xbf16>
    %c0_1 = arith.constant 0 : index
    %c0_2 = arith.constant 0 : index
    %1 = vector.load %arg2[%c0_1, %c0_2] : memref<640x384xbf16, #tpu.memory_space<vmem>>, vector<640x384xbf16>
    %cst = arith.constant dense<0.000000e+00> : vector<8x384xf32>
    %2 = tpu.matmul %0, %1, %cst {dimension_numbers = #tpu.dot_dimension_numbers<[1], [0], [0], [1], [0, 0, 1, 1], [], []>} : vector<8x640xbf16>, vector<640x384xbf16>, vector<8x384xf32> -> vector<8x384xf32>
    %c0_3 = arith.constant 0 : index
    %c0_4 = arith.constant 0 : index
    %3 = vector.load %arg3[%c0_3, %c0_4] : memref<1x384xf32, #tpu.memory_space<vmem>>, vector<1x384xf32>
    %4 = vector.broadcast %3 : vector<1x384xf32> to vector<8x384xf32>
    %5 = arith.addf %2, %4 : vector<8x384xf32>
    %6 = arith.truncf %5 : vector<8x384xf32> to vector<8x384xbf16>
    %c0_5 = arith.constant 0 : index
    %c0_6 = arith.constant 0 : index
    %7 = vector.load %arg4[%c0_5, %c0_6] : memref<8x384xbf16, #tpu.memory_space<vmem>>, vector<8x384xbf16>
    tpu.vector_store %arg4[%c0_5, %c0_6], %6 {strides = array<i32>} : memref<8x384xbf16, #tpu.memory_space<vmem>>, vector<8x384xbf16>,
    return
  }
  func.func @transform_0(%arg0: i32) -> (i32, i32) {
    %c0_i32 = arith.constant 0 : i32
    %c0_i32_0 = arith.constant 0 : i32
    return %arg0, %c0_i32 : i32, i32
  }
  func.func @transform_1(%arg0: i32) -> (i32, i32) {
    %c0_i32 = arith.constant 0 : i32
    %c0_i32_0 = arith.constant 0 : i32
    %c0_i32_1 = arith.constant 0 : i32
    return %c0_i32, %c0_i32_0 : i32, i32
  }
  func.func @transform_2(%arg0: i32) -> (i32, i32) {
    %c0_i32 = arith.constant 0 : i32
    %c0_i32_0 = arith.constant 0 : i32
    %c0_i32_1 = arith.constant 0 : i32
    return %c0_i32, %c0_i32_0 : i32, i32
  }
  func.func @transform_3(%arg0: i32) -> (i32, i32) {
    %c0_i32 = arith.constant 0 : i32
    %c0_i32_0 = arith.constant 0 : i32
    return %arg0, %c0_i32 : i32, i32
  }
}

</mosaic_0001>

<llo_original>
// kernel: tpu_custom_call.1
$region0: #{tpu_custom_call.1}
  #allocation0 [shape = 'u32[]', space=smem, size = 0x4, offset = 0x4, fixed_abs, tag = 'smem constant byte address 0x4 - core index']
  #allocation1 [shape = 'u32[72,128]{1,0:T(1,128)}', space=vmem, size = 0x9000, scoped, tag = 'internal scratch']
  %s0 = inlined_call_operand.hbm [shape: bf16[8,640], index: 0, kind: input, shape index: {}]
  %s1 = inlined_call_operand.hbm [shape: bf16[640,384], index: 1, kind: input, shape index: {}]
  %s2 = inlined_call_operand.hbm [shape: f32[1,384], index: 2, kind: input, shape index: {}]
  %s3 = inlined_call_operand.hbm [shape: bf16[8,384], index: 3, kind: output, shape index: {}]
  %s4 = sld [smem:[#allocation0]]
  $region34: #{tpu_custom_call.1} parent=0
    _
  %s6 = ssub.s32 1, %s4
  %s7 = scalar_select 0, %s6, %s4
  $region1: #{tpu_custom_call.1} parent=0
    #allocation2 [shape = 'u8[10240]{0}', space=vmem, size = 0x2800, scoped, tag = 'input window, operand 0, single buffered']
    #allocation3 [shape = 's32[1]{0}', space=sflag, size = 0x4, scoped, tag = 'scoped memory for tpu_custom_call.1']
    #allocation4 [shape = 's32[1]{0}', space=sflag, size = 0x4, scoped, tag = 'scoped memory for tpu_custom_call.1']
    #allocation5 [shape = 'u8[491520]{0}', space=vmem, size = 0x78000, scoped, tag = 'input window, operand 1, single buffered']
    #allocation6 [shape = 's32[1]{0}', space=sflag, size = 0x4, scoped, tag = 'scoped memory for tpu_custom_call.1']
    #allocation7 [shape = 'u8[1536]{0}', space=vmem, size = 0x800, scoped, tag = 'input window, operand 2, single buffered']
    #allocation8 [shape = 'u8[6144]{0}', space=vmem, size = 0x1800, scoped, tag = 'output window, operand 0, single buffered']
    %8 = vsyncpa [#allocation3], 0
    %9 = vsyncpa [#allocation6], 0
    %10 = vsyncpa [#allocation4], 0
    // Predicated region
    $region2: #{tpu_custom_call.1} parent=1 // pred_check
      _
    $region3: #{tpu_custom_call.1} parent=1 // pred_check_branch
      %12 = sbr.rel (0) target = $region5
    $region4: #{tpu_custom_call.1} parent=1 // pred_region
      %14 = vsyncadd [#allocation3], 0
      %s16 = sshll.u32 %s0, 4
      %s17 = int_to_ptr.hbm [resolvable:$true] %s16
      %s18 = sshll.u32 [#allocation2], 4
      %s19 = int_to_ptr.vmem [resolvable:$true] %s18
      %21 = dma.hbm_to_vmem [thread:$0]  %s17, 320, %s19, [#allocation3]
    $region5: #{tpu_custom_call.1} parent=1 // pred_fallthru
      _
    // Predicated region
    $region6: #{tpu_custom_call.1} parent=1 // pred_check
      _
    $region7: #{tpu_custom_call.1} parent=1 // pred_check_branch
      %23 = sbr.rel (0) target = $region9
    $region8: #{tpu_custom_call.1} parent=1 // pred_region
      %25 = vsyncadd [#allocation6], 0
      %s26 = sshll.u32 %s1, 4
      %s27 = int_to_ptr.hbm [resolvable:$true] %s26
      %s28 = sshll.u32 [#allocation5], 4
      %s29 = int_to_ptr.vmem [resolvable:$true] %s28
      %34 = dma.hbm_to_vmem [thread:$0]  %s27, 15360, %s29, [#allocation6], 192, 192, 12
    $region9: #{tpu_custom_call.1} parent=1 // pred_fallthru
      _
    // Predicated region
    $region10: #{tpu_custom_call.1} parent=1 // pred_check
      _
    $region11: #{tpu_custom_call.1} parent=1 // pred_check_branch
      %36 = sbr.rel (0) target = $region13
    $region12: #{tpu_custom_call.1} parent=1 // pred_region
      %38 = vsyncadd [#allocation6], 0
      %s40 = sshll.u32 %s2, 4
      %s41 = int_to_ptr.hbm [resolvable:$true] %s40
      %s42 = sshll.u32 [#allocation7], 4
      %s43 = int_to_ptr.vmem [resolvable:$true] %s42
      %45 = dma.hbm_to_vmem [thread:$0]  %s41, 48, %s43, [#allocation6]
    $region13: #{tpu_custom_call.1} parent=1 // pred_fallthru
      _
    // Predicated region
    $region14: #{tpu_custom_call.1} parent=1 // pred_check
      _
    $region15: #{tpu_custom_call.1} parent=1 // pred_check_branch
      %47 = sbr.rel (0) target = $region17
    $region16: #{tpu_custom_call.1} parent=1 // pred_region
      %49 = dma.done [#allocation3], 320
    $region17: #{tpu_custom_call.1} parent=1 // pred_fallthru
      _
    // Predicated region
    $region18: #{tpu_custom_call.1} parent=1 // pred_check
      _
    $region19: #{tpu_custom_call.1} parent=1 // pred_check_branch
      %51 = sbr.rel (0) target = $region21
    $region20: #{tpu_custom_call.1} parent=1 // pred_region
      %53 = dma.done [#allocation6], 15360
    $region21: #{tpu_custom_call.1} parent=1 // pred_fallthru
      _
    // Predicated region
    $region22: #{tpu_custom_call.1} parent=1 // pred_check
      _
    $region23: #{tpu_custom_call.1} parent=1 // pred_check_branch
      %55 = sbr.rel (0) target = $region25
    $region24: #{tpu_custom_call.1} parent=1 // pred_region
      %57 = dma.done [#allocation6], 48
    $region25: #{tpu_custom_call.1} parent=1 // pred_fallthru
      _
    %v58 = vld [vmem:[#allocation2] sm:$0xff]
    %v59 = vld [vmem:[#allocation2 + $0x8] sm:$0xff]
    %v60 = vld [vmem:[#allocation2 + $0x10] sm:$0xf]
    %v61 = vld [vmem:[#allocation5] sm:$0xff]
    %v62 = vld [vmem:[#allocation5 + $0x8] sm:$0xf]
    %v63 = vld [vmem:[#allocation5 + $0xc] sm:$0xff]
    %v64 = vld [vmem:[#allocation5 + $0x14] sm:$0xf]
    %v65 = vld [vmem:[#allocation5 + $0x18] sm:$0xff]
    %v66 = vld [vmem:[#allocation5 + $0x20] sm:$0xf]
    %v67 = vld [vmem:[#allocation5 + $0x24] sm:$0xff]
    %v68 = vld [vmem:[#allocation5 + $0x2c] sm:$0xf]
    %v69 = vld [vmem:[#allocation5 + $0x30] sm:$0xff]
    %v70 = vld [vmem:[#allocation5 + $0x38] sm:$0xf]
    %v71 = vld [vmem:[#allocation5 + $0x3c] sm:$0xff]
    %v72 = vld [vmem:[#allocation5 + $0x44] sm:$0xf]
    %v73 = vld [vmem:[#allocation5 + $0x48] sm:$0xff]
    %v74 = vld [vmem:[#allocation5 + $0x50] sm:$0xf]
    %v75 = vld [vmem:[#allocation5 + $0x54] sm:$0xff]
    %v76 = vld [vmem:[#allocation5 + $0x5c] sm:$0xf]
    %v77 = vld [vmem:[#allocation5 + $0x60] sm:$0xff]
    %v78 = vld [vmem:[#allocation5 + $0x68] sm:$0xf]
    %v79 = vld [vmem:[#allocation5 + $0x6c] sm:$0xff]
    %v80 = vld [vmem:[#allocation5 + $0x74] sm:$0xf]
    %v81 = vld [vmem:[#allocation5 + $0x78] sm:$0xff]
    %v82 = vld [vmem:[#allocation5 + $0x80] sm:$0xf]
    %v83 = vld [vmem:[#allocation5 + $0x84] sm:$0xff]
    %v84 = vld [vmem:[#allocation5 + $0x8c] sm:$0xf]
    %v85 = vld [vmem:[#allocation5 + $0x90] sm:$0xff]
    %v86 = vld [vmem:[#allocation5 + $0x98] sm:$0xf]
    %v87 = vld [vmem:[#allocation5 + $0x9c] sm:$0xff]
    %v88 = vld [vmem:[#allocation5 + $0xa4] sm:$0xf]
    %v89 = vld [vmem:[#allocation5 + $0xa8] sm:$0xff]
    %v90 = vld [vmem:[#allocation5 + $0xb0] sm:$0xf]
    %v91 = vld [vmem:[#allocation5 + $0xb4] sm:$0xff]
    %v92 = vld [vmem:[#allocation5 + $0xbc] sm:$0xf]
    %v93 = vld [vmem:[#allocation5 + $0xc0] sm:$0xff]
    %v94 = vld [vmem:[#allocation5 + $0xc8] sm:$0xf]
    %v95 = vld [vmem:[#allocation5 + $0xcc] sm:$0xff]
    %v96 = vld [vmem:[#allocation5 + $0xd4] sm:$0xf]
    %v97 = vld [vmem:[#allocation5 + $0xd8] sm:$0xff]
    %v98 = vld [vmem:[#allocation5 + $0xe0] sm:$0xf]
    %v99 = vld [vmem:[#allocation5 + $0xe4] sm:$0xff]
    %v100 = vld [vmem:[#allocation5 + $0xec] sm:$0xf]
    %v101 = vld [vmem:[#allocation5 + $0xf0] sm:$0xff]
    %v102 = vld [vmem:[#allocation5 + $0xf8] sm:$0xf]
    %v103 = vld [vmem:[#allocation5 + $0xfc] sm:$0xff]
    %v104 = vld [vmem:[#allocation5 + $0x104] sm:$0xf]
    %v105 = vld [vmem:[#allocation5 + $0x108] sm:$0xff]
    %v106 = vld [vmem:[#allocation5 + $0x110] sm:$0xf]
    %v107 = vld [vmem:[#allocation5 + $0x114] sm:$0xff]
    %v108 = vld [vmem:[#allocation5 + $0x11c] sm:$0xf]
    %v109 = vld [vmem:[#allocation5 + $0x120] sm:$0xff]
    %v110 = vld [vmem:[#allocation5 + $0x128] sm:$0xf]
    %v111 = vld [vmem:[#allocation5 + $0x12c] sm:$0xff]
    %v112 = vld [vmem:[#allocation5 + $0x134] sm:$0xf]
    %v113 = vld [vmem:[#allocation5 + $0x138] sm:$0xff]
    %v114 = vld [vmem:[#allocation5 + $0x140] sm:$0xf]
    %v115 = vld [vmem:[#allocation5 + $0x144] sm:$0xff]
    %v116 = vld [vmem:[#allocation5 + $0x14c] sm:$0xf]
    %v117 = vld [vmem:[#allocation5 + $0x150] sm:$0xff]
    %v118 = vld [vmem:[#allocation5 + $0x158] sm:$0xf]
    %v119 = vld [vmem:[#allocation5 + $0x15c] sm:$0xff]
    %v120 = vld [vmem:[#allocation5 + $0x164] sm:$0xf]
    %v121 = vld [vmem:[#allocation5 + $0x168] sm:$0xff]
    %v122 = vld [vmem:[#allocation5 + $0x170] sm:$0xf]
    %v123 = vld [vmem:[#allocation5 + $0x174] sm:$0xff]
    %v124 = vld [vmem:[#allocation5 + $0x17c] sm:$0xf]
    %v125 = vld [vmem:[#allocation5 + $0x180] sm:$0xff]
    %v126 = vld [vmem:[#allocation5 + $0x188] sm:$0xf]
    %v127 = vld [vmem:[#allocation5 + $0x18c] sm:$0xff]
    %v128 = vld [vmem:[#allocation5 + $0x194] sm:$0xf]
    %v129 = vld [vmem:[#allocation5 + $0x198] sm:$0xff]
    %v130 = vld [vmem:[#allocation5 + $0x1a0] sm:$0xf]
    %v131 = vld [vmem:[#allocation5 + $0x1a4] sm:$0xff]
    %v132 = vld [vmem:[#allocation5 + $0x1ac] sm:$0xf]
    %v133 = vld [vmem:[#allocation5 + $0x1b0] sm:$0xff]
    %v134 = vld [vmem:[#allocation5 + $0x1b8] sm:$0xf]
    %v135 = vld [vmem:[#allocation5 + $0x1bc] sm:$0xff]
    %v136 = vld [vmem:[#allocation5 + $0x1c4] sm:$0xf]
    %v137 = vld [vmem:[#allocation5 + $0x1c8] sm:$0xff]
    %v138 = vld [vmem:[#allocation5 + $0x1d0] sm:$0xf]
    %v139 = vld [vmem:[#allocation5 + $0x1d4] sm:$0xff]
    %v140 = vld [vmem:[#allocation5 + $0x1dc] sm:$0xf]
    %v141 = vld [vmem:[#allocation5 + $0x1e0] sm:$0xff]
    %v142 = vld [vmem:[#allocation5 + $0x1e8] sm:$0xf]
    %v143 = vld [vmem:[#allocation5 + $0x1ec] sm:$0xff]
    %v144 = vld [vmem:[#allocation5 + $0x1f4] sm:$0xf]
    %v145 = vld [vmem:[#allocation5 + $0x1f8] sm:$0xff]
    %v146 = vld [vmem:[#allocation5 + $0x200] sm:$0xf]
    %v147 = vld [vmem:[#allocation5 + $0x204] sm:$0xff]
    %v148 = vld [vmem:[#allocation5 + $0x20c] sm:$0xf]
    %v149 = vld [vmem:[#allocation5 + $0x210] sm:$0xff]
    %v150 = vld [vmem:[#allocation5 + $0x218] sm:$0xf]
    %v151 = vld [vmem:[#allocation5 + $0x21c] sm:$0xff]
    %v152 = vld [vmem:[#allocation5 + $0x224] sm:$0xf]
    %v153 = vld [vmem:[#allocation5 + $0x228] sm:$0xff]
    %v154 = vld [vmem:[#allocation5 + $0x230] sm:$0xf]
    %v155 = vld [vmem:[#allocation5 + $0x234] sm:$0xff]
    %v156 = vld [vmem:[#allocation5 + $0x23c] sm:$0xf]
    %v157 = vld [vmem:[#allocation5 + $0x240] sm:$0xff]
    %v158 = vld [vmem:[#allocation5 + $0x248] sm:$0xf]
    %v159 = vld [vmem:[#allocation5 + $0x24c] sm:$0xff]
    %v160 = vld [vmem:[#allocation5 + $0x254] sm:$0xf]
    %v161 = vld [vmem:[#allocation5 + $0x258] sm:$0xff]
    %v162 = vld [vmem:[#allocation5 + $0x260] sm:$0xf]
    %v163 = vld [vmem:[#allocation5 + $0x264] sm:$0xff]
    %v164 = vld [vmem:[#allocation5 + $0x26c] sm:$0xf]
    %v165 = vld [vmem:[#allocation5 + $0x270] sm:$0xff]
    %v166 = vld [vmem:[#allocation5 + $0x278] sm:$0xf]
    %v167 = vld [vmem:[#allocation5 + $0x27c] sm:$0xff]
    %v168 = vld [vmem:[#allocation5 + $0x284] sm:$0xf]
    %v169 = vld [vmem:[#allocation5 + $0x288] sm:$0xff]
    %v170 = vld [vmem:[#allocation5 + $0x290] sm:$0xf]
    %v171 = vld [vmem:[#allocation5 + $0x294] sm:$0xff]
    %v172 = vld [vmem:[#allocation5 + $0x29c] sm:$0xf]
    %v173 = vld [vmem:[#allocation5 + $0x2a0] sm:$0xff]
    %v174 = vld [vmem:[#allocation5 + $0x2a8] sm:$0xf]
    %v175 = vld [vmem:[#allocation5 + $0x2ac] sm:$0xff]
    %v176 = vld [vmem:[#allocation5 + $0x2b4] sm:$0xf]
    %v177 = vld [vmem:[#allocation5 + $0x2b8] sm:$0xff]
    %v178 = vld [vmem:[#allocation5 + $0x2c0] sm:$0xf]
    %v179 = vld [vmem:[#allocation5 + $0x2c4] sm:$0xff]
    %v180 = vld [vmem:[#allocation5 + $0x2cc] sm:$0xf]
    %v181 = vld [vmem:[#allocation5 + $0x2d0] sm:$0xff]
    %v182 = vld [vmem:[#allocation5 + $0x2d8] sm:$0xf]
    %v183 = vld [vmem:[#allocation5 + $0x2dc] sm:$0xff]
    %v184 = vld [vmem:[#allocation5 + $0x2e4] sm:$0xf]
    %v185 = vld [vmem:[#allocation5 + $0x2e8] sm:$0xff]
    %v186 = vld [vmem:[#allocation5 + $0x2f0] sm:$0xf]
    %v187 = vld [vmem:[#allocation5 + $0x2f4] sm:$0xff]
    %v188 = vld [vmem:[#allocation5 + $0x2fc] sm:$0xf]
    %v189 = vld [vmem:[#allocation5 + $0x300] sm:$0xff]
    %v190 = vld [vmem:[#allocation5 + $0x308] sm:$0xf]
    %v191 = vld [vmem:[#allocation5 + $0x30c] sm:$0xff]
    %v192 = vld [vmem:[#allocation5 + $0x314] sm:$0xf]
    %v193 = vld [vmem:[#allocation5 + $0x318] sm:$0xff]
    %v194 = vld [vmem:[#allocation5 + $0x320] sm:$0xf]
    %v195 = vld [vmem:[#allocation5 + $0x324] sm:$0xff]
    %v196 = vld [vmem:[#allocation5 + $0x32c] sm:$0xf]
    %v197 = vld [vmem:[#allocation5 + $0x330] sm:$0xff]
    %v198 = vld [vmem:[#allocation5 + $0x338] sm:$0xf]
    %v199 = vld [vmem:[#allocation5 + $0x33c] sm:$0xff]
    %v200 = vld [vmem:[#allocation5 + $0x344] sm:$0xf]
    %v201 = vld [vmem:[#allocation5 + $0x348] sm:$0xff]
    %v202 = vld [vmem:[#allocation5 + $0x350] sm:$0xf]
    %v203 = vld [vmem:[#allocation5 + $0x354] sm:$0xff]
    %v204 = vld [vmem:[#allocation5 + $0x35c] sm:$0xf]
    %v205 = vld [vmem:[#allocation5 + $0x360] sm:$0xff]
    %v206 = vld [vmem:[#allocation5 + $0x368] sm:$0xf]
    %v207 = vld [vmem:[#allocation5 + $0x36c] sm:$0xff]
    %v208 = vld [vmem:[#allocation5 + $0x374] sm:$0xf]
    %v209 = vld [vmem:[#allocation5 + $0x378] sm:$0xff]
    %v210 = vld [vmem:[#allocation5 + $0x380] sm:$0xf]
    %v211 = vld [vmem:[#allocation5 + $0x384] sm:$0xff]
    %v212 = vld [vmem:[#allocation5 + $0x38c] sm:$0xf]
    %v213 = vld [vmem:[#allocation5 + $0x390] sm:$0xff]
    %v214 = vld [vmem:[#allocation5 + $0x398] sm:$0xf]
    %v215 = vld [vmem:[#allocation5 + $0x39c] sm:$0xff]
    %v216 = vld [vmem:[#allocation5 + $0x3a4] sm:$0xf]
    %v217 = vld [vmem:[#allocation5 + $0x3a8] sm:$0xff]
    %v218 = vld [vmem:[#allocation5 + $0x3b0] sm:$0xf]
    %v219 = vld [vmem:[#allocation5 + $0x3b4] sm:$0xff]
    %v220 = vld [vmem:[#allocation5 + $0x3bc] sm:$0xf]
    %v221 = vld [vmem:[#allocation7] sm:$0x7]
    %v223 = vperm.slane %v221, 0
    %v224 = vperm.slane %v221, 1
    %v225 = vperm.slane %v221, 2
    %v232 = vunpack.c.l.b16 %v58
    %v233 = vunpack.c.h.b16 %v58
    %v234 = vunpack.c.l.b16 %v59
    %v235 = vunpack.c.h.b16 %v59
    %v236 = vunpack.c.l.b16 %v60
    %v237 = vpack.c.b16 %v232, %v232
    %v238 = vpack.c.b16 %v233, %v233
    %v239 = vpack.c.b16 %v234, %v234
    %v240 = vpack.c.b16 %v235, %v235
    %v241 = vpack.c.b16 %v236, %v236
    %v407 = vunpack.c.l.b16 %v61
    %v408 = vunpack.c.h.b16 %v61
    %v409 = vunpack.c.l.b16 %v62
    %v410 = vunpack.c.l.b16 %v63
    %v411 = vunpack.c.h.b16 %v63
    %v412 = vunpack.c.l.b16 %v64
    %v413 = vunpack.c.l.b16 %v65
    %v414 = vunpack.c.h.b16 %v65
    %v415 = vunpack.c.l.b16 %v66
    %v416 = vunpack.c.l.b16 %v67
    %v417 = vunpack.c.h.b16 %v67
    %v418 = vunpack.c.l.b16 %v68
    %v419 = vunpack.c.l.b16 %v69
    %v420 = vunpack.c.h.b16 %v69
    %v421 = vunpack.c.l.b16 %v70
    %v422 = vunpack.c.l.b16 %v71
    %v423 = vunpack.c.h.b16 %v71
    %v424 = vunpack.c.l.b16 %v72
    %v425 = vunpack.c.l.b16 %v73
    %v426 = vunpack.c.h.b16 %v73
    %v427 = vunpack.c.l.b16 %v74
    %v428 = vunpack.c.l.b16 %v75
    %v429 = vunpack.c.h.b16 %v75
    %v430 = vunpack.c.l.b16 %v76
    %v431 = vunpack.c.l.b16 %v77
    %v432 = vunpack.c.h.b16 %v77
    %v433 = vunpack.c.l.b16 %v78
    %v434 = vunpack.c.l.b16 %v79
    %v435 = vunpack.c.h.b16 %v79
    %v436 = vunpack.c.l.b16 %v80
    %v437 = vunpack.c.l.b16 %v81
    %v438 = vunpack.c.h.b16 %v81
    %v439 = vunpack.c.l.b16 %v82
    %v440 = vunpack.c.l.b16 %v83
    %v441 = vunpack.c.h.b16 %v83
    %v442 = vunpack.c.l.b16 %v84
    %v443 = vunpack.c.l.b16 %v85
    %v444 = vunpack.c.h.b16 %v85
    %v445 = vunpack.c.l.b16 %v86
    %v446 = vunpack.c.l.b16 %v87
    %v447 = vunpack.c.h.b16 %v87
    %v448 = vunpack.c.l.b16 %v88
    %v449 = vunpack.c.l.b16 %v89
    %v450 = vunpack.c.h.b16 %v89
    %v451 = vunpack.c.l.b16 %v90
    %v452 = vunpack.c.l.b16 %v91
    %v453 = vunpack.c.h.b16 %v91
    %v454 = vunpack.c.l.b16 %v92
    %v455 = vunpack.c.l.b16 %v93
    %v456 = vunpack.c.h.b16 %v93
    %v457 = vunpack.c.l.b16 %v94
    %v458 = vunpack.c.l.b16 %v95
    %v459 = vunpack.c.h.b16 %v95
    %v460 = vunpack.c.l.b16 %v96
    %v461 = vunpack.c.l.b16 %v97
    %v462 = vunpack.c.h.b16 %v97
    %v463 = vunpack.c.l.b16 %v98
    %v464 = vunpack.c.l.b16 %v99
    %v465 = vunpack.c.h.b16 %v99
    %v466 = vunpack.c.l.b16 %v100
    %v467 = vunpack.c.l.b16 %v101
    %v468 = vunpack.c.h.b16 %v101
    %v469 = vunpack.c.l.b16 %v102
    %v470 = vunpack.c.l.b16 %v103
    %v471 = vunpack.c.h.b16 %v103
    %v472 = vunpack.c.l.b16 %v104
    %v473 = vunpack.c.l.b16 %v105
    %v474 = vunpack.c.h.b16 %v105
    %v475 = vunpack.c.l.b16 %v106
    %v476 = vunpack.c.l.b16 %v107
    %v477 = vunpack.c.h.b16 %v107
    %v478 = vunpack.c.l.b16 %v108
    %v479 = vunpack.c.l.b16 %v109
    %v480 = vunpack.c.h.b16 %v109
    %v481 = vunpack.c.l.b16 %v110
    %v482 = vunpack.c.l.b16 %v111
    %v483 = vunpack.c.h.b16 %v111
    %v484 = vunpack.c.l.b16 %v112
    %v485 = vunpack.c.l.b16 %v113
    %v486 = vunpack.c.h.b16 %v113
    %v487 = vunpack.c.l.b16 %v114
    %v488 = vunpack.c.l.b16 %v115
    %v489 = vunpack.c.h.b16 %v115
    %v490 = vunpack.c.l.b16 %v116
    %v491 = vunpack.c.l.b16 %v117
    %v492 = vunpack.c.h.b16 %v117
    %v493 = vunpack.c.l.b16 %v118
    %v494 = vunpack.c.l.b16 %v119
    %v495 = vunpack.c.h.b16 %v119
    %v496 = vunpack.c.l.b16 %v120
    %v497 = vunpack.c.l.b16 %v121
    %v498 = vunpack.c.h.b16 %v121
    %v499 = vunpack.c.l.b16 %v122
    %v500 = vunpack.c.l.b16 %v123
    %v501 = vunpack.c.h.b16 %v123
    %v502 = vunpack.c.l.b16 %v124
    %v503 = vunpack.c.l.b16 %v125
    %v504 = vunpack.c.h.b16 %v125
    %v505 = vunpack.c.l.b16 %v126
    %v506 = vunpack.c.l.b16 %v127
    %v507 = vunpack.c.h.b16 %v127
    %v508 = vunpack.c.l.b16 %v128
    %v509 = vunpack.c.l.b16 %v129
    %v510 = vunpack.c.h.b16 %v129
    %v511 = vunpack.c.l.b16 %v130
    %v512 = vunpack.c.l.b16 %v131
    %v513 = vunpack.c.h.b16 %v131
    %v514 = vunpack.c.l.b16 %v132
    %v515 = vunpack.c.l.b16 %v133
    %v516 = vunpack.c.h.b16 %v133
    %v517 = vunpack.c.l.b16 %v134
    %v518 = vunpack.c.l.b16 %v135
    %v519 = vunpack.c.h.b16 %v135
    %v520 = vunpack.c.l.b16 %v136
    %v521 = vunpack.c.l.b16 %v137
    %v522 = vunpack.c.h.b16 %v137
    %v523 = vunpack.c.l.b16 %v138
    %v524 = vunpack.c.l.b16 %v139
    %v525 = vunpack.c.h.b16 %v139
    %v526 = vunpack.c.l.b16 %v140
    %v527 = vunpack.c.l.b16 %v141
    %v528 = vunpack.c.h.b16 %v141
    %v529 = vunpack.c.l.b16 %v142
    %v530 = vunpack.c.l.b16 %v143
    %v531 = vunpack.c.h.b16 %v143
    %v532 = vunpack.c.l.b16 %v144
    %v533 = vunpack.c.l.b16 %v145
    %v534 = vunpack.c.h.b16 %v145
    %v535 = vunpack.c.l.b16 %v146
    %v536 = vunpack.c.l.b16 %v147
    %v537 = vunpack.c.h.b16 %v147
    %v538 = vunpack.c.l.b16 %v148
    %v539 = vunpack.c.l.b16 %v149
    %v540 = vunpack.c.h.b16 %v149
    %v541 = vunpack.c.l.b16 %v150
    %v542 = vunpack.c.l.b16 %v151
    %v543 = vunpack.c.h.b16 %v151
    %v544 = vunpack.c.l.b16 %v152
    %v545 = vunpack.c.l.b16 %v153
    %v546 = vunpack.c.h.b16 %v153
    %v547 = vunpack.c.l.b16 %v154
    %v548 = vunpack.c.l.b16 %v155
    %v549 = vunpack.c.h.b16 %v155
    %v550 = vunpack.c.l.b16 %v156
    %v551 = vunpack.c.l.b16 %v157
    %v552 = vunpack.c.h.b16 %v157
    %v553 = vunpack.c.l.b16 %v158
    %v554 = vunpack.c.l.b16 %v159
    %v555 = vunpack.c.h.b16 %v159
    %v556 = vunpack.c.l.b16 %v160
    %v557 = vunpack.c.l.b16 %v161
    %v558 = vunpack.c.h.b16 %v161
    %v559 = vunpack.c.l.b16 %v162
    %v560 = vunpack.c.l.b16 %v163
    %v561 = vunpack.c.h.b16 %v163
    %v562 = vunpack.c.l.b16 %v164
    %v563 = vunpack.c.l.b16 %v165
    %v564 = vunpack.c.h.b16 %v165
    %v565 = vunpack.c.l.b16 %v166
    %v566 = vunpack.c.l.b16 %v167
    %v567 = vunpack.c.h.b16 %v167
    %v568 = vunpack.c.l.b16 %v168
    %v569 = vunpack.c.l.b16 %v169
    %v570 = vunpack.c.h.b16 %v169
    %v571 = vunpack.c.l.b16 %v170
    %v572 = vunpack.c.l.b16 %v171
    %v573 = vunpack.c.h.b16 %v171
    %v574 = vunpack.c.l.b16 %v172
    %v575 = vunpack.c.l.b16 %v173
    %v576 = vunpack.c.h.b16 %v173
    %v577 = vunpack.c.l.b16 %v174
    %v578 = vunpack.c.l.b16 %v175
    %v579 = vunpack.c.h.b16 %v175
    %v580 = vunpack.c.l.b16 %v176
    %v581 = vunpack.c.l.b16 %v177
    %v582 = vunpack.c.h.b16 %v177
    %v583 = vunpack.c.l.b16 %v178
    %v584 = vunpack.c.l.b16 %v179
    %v585 = vunpack.c.h.b16 %v179
    %v586 = vunpack.c.l.b16 %v180
    %v587 = vunpack.c.l.b16 %v181
    %v588 = vunpack.c.h.b16 %v181
    %v589 = vunpack.c.l.b16 %v182
    %v590 = vunpack.c.l.b16 %v183
    %v591 = vunpack.c.h.b16 %v183
    %v592 = vunpack.c.l.b16 %v184
    %v593 = vunpack.c.l.b16 %v185
    %v594 = vunpack.c.h.b16 %v185
    %v595 = vunpack.c.l.b16 %v186
    %v596 = vunpack.c.l.b16 %v187
    %v597 = vunpack.c.h.b16 %v187
    %v598 = vunpack.c.l.b16 %v188
    %v599 = vunpack.c.l.b16 %v189
    %v600 = vunpack.c.h.b16 %v189
    %v601 = vunpack.c.l.b16 %v190
    %v602 = vunpack.c.l.b16 %v191
    %v603 = vunpack.c.h.b16 %v191
    %v604 = vunpack.c.l.b16 %v192
    %v605 = vunpack.c.l.b16 %v193
    %v606 = vunpack.c.h.b16 %v193
    %v607 = vunpack.c.l.b16 %v194
    %v608 = vunpack.c.l.b16 %v195
    %v609 = vunpack.c.h.b16 %v195
    %v610 = vunpack.c.l.b16 %v196
    %v611 = vunpack.c.l.b16 %v197
    %v612 = vunpack.c.h.b16 %v197
    %v613 = vunpack.c.l.b16 %v198
    %v614 = vunpack.c.l.b16 %v199
    %v615 = vunpack.c.h.b16 %v199
    %v616 = vunpack.c.l.b16 %v200
    %v617 = vunpack.c.l.b16 %v201
    %v618 = vunpack.c.h.b16 %v201
    %v619 = vunpack.c.l.b16 %v202
    %v620 = vunpack.c.l.b16 %v203
    %v621 = vunpack.c.h.b16 %v203
    %v622 = vunpack.c.l.b16 %v204
    %v623 = vunpack.c.l.b16 %v205
    %v624 = vunpack.c.h.b16 %v205
    %v625 = vunpack.c.l.b16 %v206
    %v626 = vunpack.c.l.b16 %v207
    %v627 = vunpack.c.h.b16 %v207
    %v628 = vunpack.c.l.b16 %v208
    %v629 = vunpack.c.l.b16 %v209
    %v630 = vunpack.c.h.b16 %v209
    %v631 = vunpack.c.l.b16 %v210
    %v632 = vunpack.c.l.b16 %v211
    %v633 = vunpack.c.h.b16 %v211
    %v634 = vunpack.c.l.b16 %v212
    %v635 = vunpack.c.l.b16 %v213
    %v636 = vunpack.c.h.b16 %v213
    %v637 = vunpack.c.l.b16 %v214
    %v638 = vunpack.c.l.b16 %v215
    %v639 = vunpack.c.h.b16 %v215
    %v640 = vunpack.c.l.b16 %v216
    %v641 = vunpack.c.l.b16 %v217
    %v642 = vunpack.c.h.b16 %v217
    %v643 = vunpack.c.l.b16 %v218
    %v644 = vunpack.c.l.b16 %v219
    %v645 = vunpack.c.h.b16 %v219
    %v646 = vunpack.c.l.b16 %v220
    %v647 = vpack.c.b16 %v410, %v407
    %v648 = vpack.c.b16 %v411, %v408
    %v649 = vpack.c.b16 %v412, %v409
    %v650 = vpack.c.b16 %v416, %v413
    %v651 = vpack.c.b16 %v417, %v414
    %v652 = vpack.c.b16 %v418, %v415
    %v653 = vpack.c.b16 %v422, %v419
    %v654 = vpack.c.b16 %v423, %v420
    %v655 = vpack.c.b16 %v424, %v421
    %v656 = vpack.c.b16 %v428, %v425
    %v657 = vpack.c.b16 %v429, %v426
    %v658 = vpack.c.b16 %v430, %v427
    %v659 = vpack.c.b16 %v434, %v431
    %v660 = vpack.c.b16 %v435, %v432
    %v661 = vpack.c.b16 %v436, %v433
    %v662 = vpack.c.b16 %v440, %v437
    %v663 = vpack.c.b16 %v441, %v438
    %v664 = vpack.c.b16 %v442, %v439
    %v665 = vpack.c.b16 %v446, %v443
    %v666 = vpack.c.b16 %v447, %v444
    %v667 = vpack.c.b16 %v448, %v445
    %v668 = vpack.c.b16 %v452, %v449
    %v669 = vpack.c.b16 %v453, %v450
    %v670 = vpack.c.b16 %v454, %v451
    %v671 = vpack.c.b16 %v458, %v455
    %v672 = vpack.c.b16 %v459, %v456
    %v673 = vpack.c.b16 %v460, %v457
    %v674 = vpack.c.b16 %v464, %v461
    %v675 = vpack.c.b16 %v465, %v462
    %v676 = vpack.c.b16 %v466, %v463
    %v677 = vpack.c.b16 %v470, %v467
    %v678 = vpack.c.b16 %v471, %v468
    %v679 = vpack.c.b16 %v472, %v469
    %v680 = vpack.c.b16 %v476, %v473
    %v681 = vpack.c.b16 %v477, %v474
    %v682 = vpack.c.b16 %v478, %v475
    %v683 = vpack.c.b16 %v482, %v479
    %v684 = vpack.c.b16 %v483, %v480
    %v685 = vpack.c.b16 %v484, %v481
    %v686 = vpack.c.b16 %v488, %v485
    %v687 = vpack.c.b16 %v489, %v486
    %v688 = vpack.c.b16 %v490, %v487
    %v689 = vpack.c.b16 %v494, %v491
    %v690 = vpack.c.b16 %v495, %v492
    %v691 = vpack.c.b16 %v496, %v493
    %v692 = vpack.c.b16 %v500, %v497
    %v693 = vpack.c.b16 %v501, %v498
    %v694 = vpack.c.b16 %v502, %v499
    %v695 = vpack.c.b16 %v506, %v503
    %v696 = vpack.c.b16 %v507, %v504
    %v697 = vpack.c.b16 %v508, %v505
    %v698 = vpack.c.b16 %v512, %v509
    %v699 = vpack.c.b16 %v513, %v510
    %v700 = vpack.c.b16 %v514, %v511
    %v701 = vpack.c.b16 %v518, %v515
    %v702 = vpack.c.b16 %v519, %v516
    %v703 = vpack.c.b16 %v520, %v517
    %v704 = vpack.c.b16 %v524, %v521
    %v705 = vpack.c.b16 %v525, %v522
    %v706 = vpack.c.b16 %v526, %v523
    %v707 = vpack.c.b16 %v530, %v527
    %v708 = vpack.c.b16 %v531, %v528
    %v709 = vpack.c.b16 %v532, %v529
    %v710 = vpack.c.b16 %v536, %v533
    %v711 = vpack.c.b16 %v537, %v534
    %v712 = vpack.c.b16 %v538, %v535
    %v713 = vpack.c.b16 %v542, %v539
    %v714 = vpack.c.b16 %v543, %v540
    %v715 = vpack.c.b16 %v544, %v541
    %v716 = vpack.c.b16 %v548, %v545
    %v717 = vpack.c.b16 %v549, %v546
    %v718 = vpack.c.b16 %v550, %v547
    %v719 = vpack.c.b16 %v554, %v551
    %v720 = vpack.c.b16 %v555, %v552
    %v721 = vpack.c.b16 %v556, %v553
    %v722 = vpack.c.b16 %v560, %v557
    %v723 = vpack.c.b16 %v561, %v558
    %v724 = vpack.c.b16 %v562, %v559
    %v725 = vpack.c.b16 %v566, %v563
    %v726 = vpack.c.b16 %v567, %v564
    %v727 = vpack.c.b16 %v568, %v565
    %v728 = vpack.c.b16 %v572, %v569
    %v729 = vpack.c.b16 %v573, %v570
    %v730 = vpack.c.b16 %v574, %v571
    %v731 = vpack.c.b16 %v578, %v575
    %v732 = vpack.c.b16 %v579, %v576
    %v733 = vpack.c.b16 %v580, %v577
    %v734 = vpack.c.b16 %v584, %v581
    %v735 = vpack.c.b16 %v585, %v582
    %v736 = vpack.c.b16 %v586, %v583
    %v737 = vpack.c.b16 %v590, %v587
    %v738 = vpack.c.b16 %v591, %v588
    %v739 = vpack.c.b16 %v592, %v589
    %v740 = vpack.c.b16 %v596, %v593
    %v741 = vpack.c.b16 %v597, %v594
    %v742 = vpack.c.b16 %v598, %v595
    %v743 = vpack.c.b16 %v602, %v599
    %v744 = vpack.c.b16 %v603, %v600
    %v745 = vpack.c.b16 %v604, %v601
    %v746 = vpack.c.b16 %v608, %v605
    %v747 = vpack.c.b16 %v609, %v606
    %v748 = vpack.c.b16 %v610, %v607
    %v749 = vpack.c.b16 %v614, %v611
    %v750 = vpack.c.b16 %v615, %v612
    %v751 = vpack.c.b16 %v616, %v613
    %v752 = vpack.c.b16 %v620, %v617
    %v753 = vpack.c.b16 %v621, %v618
    %v754 = vpack.c.b16 %v622, %v619
    %v755 = vpack.c.b16 %v626, %v623
    %v756 = vpack.c.b16 %v627, %v624
    %v757 = vpack.c.b16 %v628, %v625
    %v758 = vpack.c.b16 %v632, %v629
    %v759 = vpack.c.b16 %v633, %v630
    %v760 = vpack.c.b16 %v634, %v631
    %v761 = vpack.c.b16 %v638, %v635
    %v762 = vpack.c.b16 %v639, %v636
    %v763 = vpack.c.b16 %v640, %v637
    %v764 = vpack.c.b16 %v644, %v641
    %v765 = vpack.c.b16 %v645, %v642
    %v766 = vpack.c.b16 %v646, %v643
    %887 = vmatpush.bf16.msra.mxu0 %v668
    %888 = vmatpush.bf16.msra.mxu0 %v665
    %889 = vmatpush.bf16.msra.mxu0 %v662
    %890 = vmatpush.bf16.msra.mxu0 %v659
    %891 = vmatpush.bf16.msra.mxu0 %v656
    %892 = vmatpush.bf16.msra.mxu0 %v653
    %893 = vmatpush.bf16.msra.mxu0 %v650
    %894 = vmatpush.bf16.msra.mxu0 %v647
    %895 = vmatmul.bf16.gmra.mxu0 %v237
    %v896 = vpop.f32.mrf.mxu0
    %v897 = vadd.f32 %v223, %v896
    %v898 = vpop.f32.mrf.mxu0
    %899 = vdwg.mxu0
    %900 = vmatpush.bf16.msra.mxu0 %v692
    %901 = vmatpush.bf16.msra.mxu0 %v689
    %902 = vmatpush.bf16.msra.mxu0 %v686
    %903 = vmatpush.bf16.msra.mxu0 %v683
    %904 = vmatpush.bf16.msra.mxu0 %v680
    %905 = vmatpush.bf16.msra.mxu0 %v677
    %906 = vmatpush.bf16.msra.mxu0 %v674
    %907 = vmatpush.bf16.msra.mxu0 %v671
    %908 = vmatmul.bf16.gmra.mxu0 %v238
    %v909 = vpop.f32.mrf.mxu0
    %v910 = vadd.f32 %v897, %v909
    %v911 = vpop.f32.mrf.mxu0
    %912 = vdwg.mxu0
    %913 = vmatpush.bf16.msra.mxu0 %v716
    %914 = vmatpush.bf16.msra.mxu0 %v713
    %915 = vmatpush.bf16.msra.mxu0 %v710
    %916 = vmatpush.bf16.msra.mxu0 %v707
    %917 = vmatpush.bf16.msra.mxu0 %v704
    %918 = vmatpush.bf16.msra.mxu0 %v701
    %919 = vmatpush.bf16.msra.mxu0 %v698
    %920 = vmatpush.bf16.msra.mxu0 %v695
    %921 = vmatmul.bf16.gmra.mxu0 %v239
    %v922 = vpop.f32.mrf.mxu0
    %v923 = vadd.f32 %v910, %v922
    %v924 = vpop.f32.mrf.mxu0
    %925 = vdwg.mxu0
    %926 = vmatpush.bf16.msra.mxu0 %v740
    %927 = vmatpush.bf16.msra.mxu0 %v737
    %928 = vmatpush.bf16.msra.mxu0 %v734
    %929 = vmatpush.bf16.msra.mxu0 %v731
    %930 = vmatpush.bf16.msra.mxu0 %v728
    %931 = vmatpush.bf16.msra.mxu0 %v725
    %932 = vmatpush.bf16.msra.mxu0 %v722
    %933 = vmatpush.bf16.msra.mxu0 %v719
    %934 = vmatmul.bf16.gmra.mxu0 %v240
    %v935 = vpop.f32.mrf.mxu0
    %v936 = vadd.f32 %v923, %v935
    %v937 = vpop.f32.mrf.mxu0
    %938 = vdwg.mxu0
    %939 = vmatpush.bf16.msra.mxu0 %v764
    %940 = vmatpush.bf16.msra.mxu0 %v761
    %941 = vmatpush.bf16.msra.mxu0 %v758
    %942 = vmatpush.bf16.msra.mxu0 %v755
    %943 = vmatpush.bf16.msra.mxu0 %v752
    %944 = vmatpush.bf16.msra.mxu0 %v749
    %945 = vmatpush.bf16.msra.mxu0 %v746
    %946 = vmatpush.bf16.msra.mxu0 %v743
    %947 = vmatmul.bf16.gmra.mxu0 %v241
    %v948 = vpop.f32.mrf.mxu0
    %v949 = vadd.f32 %v936, %v948
    %v950 = vpop.f32.mrf.mxu0
    %951 = vdwg.mxu0
    %952 = vmatpush.bf16.msra.mxu0 %v669
    %953 = vmatpush.bf16.msra.mxu0 %v666
    %954 = vmatpush.bf16.msra.mxu0 %v663
    %955 = vmatpush.bf16.msra.mxu0 %v660
    %956 = vmatpush.bf16.msra.mxu0 %v657
    %957 = vmatpush.bf16.msra.mxu0 %v654
    %958 = vmatpush.bf16.msra.mxu0 %v651
    %959 = vmatpush.bf16.msra.mxu0 %v648
    %960 = vmatmul.bf16.gmra.mxu0 %v237
    %v961 = vpop.f32.mrf.mxu0
    %v962 = vadd.f32 %v224, %v961
    %v963 = vpop.f32.mrf.mxu0
    %964 = vdwg.mxu0
    %965 = vmatpush.bf16.msra.mxu0 %v693
    %966 = vmatpush.bf16.msra.mxu0 %v690
    %967 = vmatpush.bf16.msra.mxu0 %v687
    %968 = vmatpush.bf16.msra.mxu0 %v684
    %969 = vmatpush.bf16.msra.mxu0 %v681
    %970 = vmatpush.bf16.msra.mxu0 %v678
    %971 = vmatpush.bf16.msra.mxu0 %v675
    %972 = vmatpush.bf16.msra.mxu0 %v672
    %973 = vmatmul.bf16.gmra.mxu0 %v238
    %v974 = vpop.f32.mrf.mxu0
    %v975 = vadd.f32 %v962, %v974
    %v976 = vpop.f32.mrf.mxu0
    %977 = vdwg.mxu0
    %978 = vmatpush.bf16.msra.mxu0 %v717
    %979 = vmatpush.bf16.msra.mxu0 %v714
    %980 = vmatpush.bf16.msra.mxu0 %v711
    %981 = vmatpush.bf16.msra.mxu0 %v708
    %982 = vmatpush.bf16.msra.mxu0 %v705
    %983 = vmatpush.bf16.msra.mxu0 %v702
    %984 = vmatpush.bf16.msra.mxu0 %v699
    %985 = vmatpush.bf16.msra.mxu0 %v696
    %986 = vmatmul.bf16.gmra.mxu0 %v239
    %v987 = vpop.f32.mrf.mxu0
    %v988 = vadd.f32 %v975, %v987
    %v989 = vpop.f32.mrf.mxu0
    %990 = vdwg.mxu0
    %991 = vmatpush.bf16.msra.mxu0 %v741
    %992 = vmatpush.bf16.msra.mxu0 %v738
    %993 = vmatpush.bf16.msra.mxu0 %v735
    %994 = vmatpush.bf16.msra.mxu0 %v732
    %995 = vmatpush.bf16.msra.mxu0 %v729
    %996 = vmatpush.bf16.msra.mxu0 %v726
    %997 = vmatpush.bf16.msra.mxu0 %v723
    %998 = vmatpush.bf16.msra.mxu0 %v720
    %999 = vmatmul.bf16.gmra.mxu0 %v240
    %v1000 = vpop.f32.mrf.mxu0
    %v1001 = vadd.f32 %v988, %v1000
    %v1002 = vpop.f32.mrf.mxu0
    %1003 = vdwg.mxu0
    %1004 = vmatpush.bf16.msra.mxu0 %v765
    %1005 = vmatpush.bf16.msra.mxu0 %v762
    %1006 = vmatpush.bf16.msra.mxu0 %v759
    %1007 = vmatpush.bf16.msra.mxu0 %v756
    %1008 = vmatpush.bf16.msra.mxu0 %v753
    %1009 = vmatpush.bf16.msra.mxu0 %v750
    %1010 = vmatpush.bf16.msra.mxu0 %v747
    %1011 = vmatpush.bf16.msra.mxu0 %v744
    %1012 = vmatmul.bf16.gmra.mxu0 %v241
    %v1013 = vpop.f32.mrf.mxu0
    %v1014 = vadd.f32 %v1001, %v1013
    %v1015 = vpop.f32.mrf.mxu0
    %1016 = vdwg.mxu0
    %1017 = vmatpush.bf16.msra.mxu0 %v670
    %1018 = vmatpush.bf16.msra.mxu0 %v667
    %1019 = vmatpush.bf16.msra.mxu0 %v664
    %1020 = vmatpush.bf16.msra.mxu0 %v661
    %1021 = vmatpush.bf16.msra.mxu0 %v658
    %1022 = vmatpush.bf16.msra.mxu0 %v655
    %1023 = vmatpush.bf16.msra.mxu0 %v652
    %1024 = vmatpush.bf16.msra.mxu0 %v649
    %1025 = vmatmul.bf16.gmra.mxu0 %v237
    %v1026 = vpop.f32.mrf.mxu0
    %v1027 = vadd.f32 %v225, %v1026
    %v1028 = vpop.f32.mrf.mxu0
    %1029 = vdwg.mxu0
    %1030 = vmatpush.bf16.msra.mxu0 %v694
    %1031 = vmatpush.bf16.msra.mxu0 %v691
    %1032 = vmatpush.bf16.msra.mxu0 %v688
    %1033 = vmatpush.bf16.msra.mxu0 %v685
    %1034 = vmatpush.bf16.msra.mxu0 %v682
    %1035 = vmatpush.bf16.msra.mxu0 %v679
    %1036 = vmatpush.bf16.msra.mxu0 %v676
    %1037 = vmatpush.bf16.msra.mxu0 %v673
    %1038 = vmatmul.bf16.gmra.mxu0 %v238
    %v1039 = vpop.f32.mrf.mxu0
    %v1040 = vadd.f32 %v1027, %v1039
    %v1041 = vpop.f32.mrf.mxu0
    %1042 = vdwg.mxu0
    %1043 = vmatpush.bf16.msra.mxu0 %v718
    %1044 = vmatpush.bf16.msra.mxu0 %v715
    %1045 = vmatpush.bf16.msra.mxu0 %v712
    %1046 = vmatpush.bf16.msra.mxu0 %v709
    %1047 = vmatpush.bf16.msra.mxu0 %v706
    %1048 = vmatpush.bf16.msra.mxu0 %v703
    %1049 = vmatpush.bf16.msra.mxu0 %v700
    %1050 = vmatpush.bf16.msra.mxu0 %v697
    %1051 = vmatmul.bf16.gmra.mxu0 %v239
    %v1052 = vpop.f32.mrf.mxu0
    %v1053 = vadd.f32 %v1040, %v1052
    %v1054 = vpop.f32.mrf.mxu0
    %1055 = vdwg.mxu0
    %1056 = vmatpush.bf16.msra.mxu0 %v742
    %1057 = vmatpush.bf16.msra.mxu0 %v739
    %1058 = vmatpush.bf16.msra.mxu0 %v736
    %1059 = vmatpush.bf16.msra.mxu0 %v733
    %1060 = vmatpush.bf16.msra.mxu0 %v730
    %1061 = vmatpush.bf16.msra.mxu0 %v727
    %1062 = vmatpush.bf16.msra.mxu0 %v724
    %1063 = vmatpush.bf16.msra.mxu0 %v721
    %1064 = vmatmul.bf16.gmra.mxu0 %v240
    %v1065 = vpop.f32.mrf.mxu0
    %v1066 = vadd.f32 %v1053, %v1065
    %v1067 = vpop.f32.mrf.mxu0
    %1068 = vdwg.mxu0
    %1069 = vmatpush.bf16.msra.mxu0 %v766
    %1070 = vmatpush.bf16.msra.mxu0 %v763
    %1071 = vmatpush.bf16.msra.mxu0 %v760
    %1072 = vmatpush.bf16.msra.mxu0 %v757
    %1073 = vmatpush.bf16.msra.mxu0 %v754
    %1074 = vmatpush.bf16.msra.mxu0 %v751
    %1075 = vmatpush.bf16.msra.mxu0 %v748
    %1076 = vmatpush.bf16.msra.mxu0 %v745
    %1077 = vmatmul.bf16.gmra.mxu0 %v241
    %v1078 = vpop.f32.mrf.mxu0
    %v1079 = vadd.f32 %v1066, %v1078
    %v1080 = vpop.f32.mrf.mxu0
    %1081 = vdwg.mxu0
    %v1082 = vpack.c.bf16 %v1014, %v949
    %v1083 = vpack.c.bf16 %v1079, %v1079
    %1084 = vst [vmem:[#allocation8] sm:$0xff] %v1082
    %1085 = vst [vmem:[#allocation8 + $0x8] sm:$0xf] %v1083
    // Predicated region
    $region26: #{tpu_custom_call.1} parent=1 // pred_check
      _
    $region27: #{tpu_custom_call.1} parent=1 // pred_check_branch
      %1087 = sbr.rel (0) target = $region29
    $region28: #{tpu_custom_call.1} parent=1 // pred_region
      %1089 = vsyncadd [#allocation4], 0
      %s1091 = sshll.u32 [#allocation8], 4
      %s1092 = int_to_ptr.vmem [resolvable:$true] %s1091
      %s1093 = sshll.u32 %s3, 4
      %s1094 = int_to_ptr.hbm [resolvable:$true] %s1093
      %1096 = dma.vmem_to_hbm [thread:$0]  %s1092, 192, %s1094, [#allocation4]
    $region29: #{tpu_custom_call.1} parent=1 // pred_fallthru
      _
    // Predicated region
    $region30: #{tpu_custom_call.1} parent=1 // pred_check
      _
    $region31: #{tpu_custom_call.1} parent=1 // pred_check_branch
      %1098 = sbr.rel (0) target = $region33
    $region32: #{tpu_custom_call.1} parent=1 // pred_region
      %1100 = dma.done [#allocation4], 192
    $region33: #{tpu_custom_call.1} parent=1 // pred_fallthru
      _
    %1101 = vsyncpa [#allocation3], 1
    %1102 = vsyncpa [#allocation6], 1
    %1103 = vsyncpa [#allocation4], 1

</llo_original>
